<compile_context>
chip_gen: v6e
topology: v6e:2x2x1
jax: 0.10.0
libtpu: 0.0.40
codegen_flags: <defaults>
</compile_context>

<pallas_src>
import math

import jax
import jax.numpy as jnp
from jax.experimental import pallas as pl
from jax.experimental.pallas import tpu as pltpu


def _mlp_kernel(sl_ref, al_ref, sf_ref, af_ref,
                w1a_ref, w1b_ref, w1c_ref, w1d_ref, b1_ref,
                w2_ref, b2_ref, w3_ref, b3_ref, o_ref):
    cdt = w2_ref.dtype  # MXU operand dtype (f32 or bf16); accumulation is f32.

    # fc1 as four partial dots over the un-concatenated inputs.
    acc = jnp.dot(sl_ref[...], w1a_ref[...], preferred_element_type=jnp.float32)
    acc = acc + jnp.dot(al_ref[...], w1b_ref[...], preferred_element_type=jnp.float32)
    acc = acc + jnp.dot(sf_ref[...], w1c_ref[...], preferred_element_type=jnp.float32)
    acc = acc + jnp.dot(af_ref[...], w1d_ref[...], preferred_element_type=jnp.float32)
    h1 = jnp.maximum(acc + b1_ref[...], 0.0)                        # (T, H) f32

    h2 = jnp.dot(h1.astype(cdt), w2_ref[...], preferred_element_type=jnp.float32)
    h2 = jnp.maximum(h2 + b2_ref[...], 0.0)                         # (T, H) f32

    # fc_out: contract (1, H) with (T, H) over H -> (1, T).  Batch lands on the
    # lane axis, so the store below is lane-dense (no N=1 masked column store).
    out_row = jax.lax.dot_general(
        w3_ref[...], h2.astype(cdt),
        dimension_numbers=(((1,), (1,)), ((), ())),
        preferred_element_type=jnp.float32)                         # (1, T)
    o_ref[...] = out_row + b3_ref[...]


def bi_q_value_net_forward(sl, al, mean_sf, mean_af, params, *,
                           batch_tile=None, compute_dtype=jnp.float32):
    """Pallas implementation of BiQValueNet.forward.

    sl:      (B, gov_state_dim)
    al:      (B, gov_action_dim)
    mean_sf: (B, mean_state_dim)
    mean_af: (B, mean_action_dim)
    returns: (B, 1) float32

    On v6e/v7x pass compute_dtype=jnp.bfloat16 to halve HBM traffic for the
    activation/weight stream (accumulation stays f32).
    """
    B = sl.shape[0]
    d0, d1, d2, d3 = sl.shape[1], al.shape[1], mean_sf.shape[1], mean_af.shape[1]
    w1, b1 = params["w1"], params["b1"]
    w2, b2 = params["w2"], params["b2"]
    w3, b3 = params["w3"], params["b3"]
    H = w1.shape[1]
    assert w1.shape[0] == d0 + d1 + d2 + d3
    assert w3.shape == (1, H)

    # Split fc1's weight into one row-slab per input (no concat anywhere).
    o1, o2, o3 = d0, d0 + d1, d0 + d1 + d2
    w1a, w1b, w1c, w1d = w1[:o1], w1[o1:o2], w1[o2:o3], w1[o3:]

    # MXU operands in compute_dtype; biases / accumulation stay f32.
    cdt = compute_dtype
    sl, al, mean_sf, mean_af = (x.astype(cdt) for x in (sl, al, mean_sf, mean_af))
    w1a, w1b, w1c, w1d, w2, w3 = (w.astype(cdt) for w in (w1a, w1b, w1c, w1d, w2, w3))
    b1, b2, b3 = (b.astype(jnp.float32) for b in (b1, b2, b3))

    # Capped batch tile: multiple of 128 with >= 2 grid steps when possible
    # (pipelining + v7x megacore), otherwise the whole (small) batch at once.
    if batch_tile is None:
        batch_tile = B
        for cand in (1024, 512, 256, 128):
            if B % cand == 0 and B // cand >= 2:
                batch_tile = cand
                break
    if B % batch_tile != 0 or not (batch_tile == B or batch_tile % 128 == 0):
        raise ValueError(
            "batch_tile must divide the batch size and be a multiple of 128 "
            "(or equal to the batch size)")
    grid = (B // batch_tile,)

    act_spec = lambda d: pl.BlockSpec((batch_tile, d), lambda i: (i, 0))
    # Weights/biases are tiny and index-invariant across the grid; Pallas skips
    # re-DMA of blocks whose index does not change between steps.
    const_spec = lambda shape: pl.BlockSpec(shape, lambda i: (0, 0))

    out_row = pl.pallas_call(
        _mlp_kernel,
        out_shape=jax.ShapeDtypeStruct((1, B), jnp.float32),
        grid_spec=pltpu.PrefetchScalarGridSpec(
            num_scalar_prefetch=0,
            grid=grid,
            in_specs=[
                act_spec(d0), act_spec(d1), act_spec(d2), act_spec(d3),
                const_spec((d0, H)), const_spec((d1, H)),
                const_spec((d2, H)), const_spec((d3, H)),
                const_spec((1, H)),
                const_spec((H, H)), const_spec((1, H)),
                const_spec((1, H)), const_spec((1, 1)),
            ],
            # Lane-dense output: grid step i writes columns [i*T, (i+1)*T).
            out_specs=pl.BlockSpec((1, batch_tile), lambda i: (0, i)),
        ),
        compiler_params=pltpu.CompilerParams(
            dimension_semantics=("parallel",)),
    )(sl, al, mean_sf, mean_af, w1a, w1b, w1c, w1d, b1, w2, b2, w3, b3)

    return out_row.reshape(B, 1)


def init_params(key, gov_state_dim, gov_action_dim, mean_state_dim,
                mean_action_dim, hidden_dim):
    """Deterministic init mimicking PyTorch nn.Linear defaults
    (U(-1/sqrt(fan_in), 1/sqrt(fan_in)) for weights and biases)."""
    d_in = gov_state_dim + gov_action_dim + mean_state_dim + mean_action_dim
    ks = jax.random.split(key, 6)

    def lin(kw, kb, fan_in, w_shape, b_shape):
        bound = 1.0 / math.sqrt(fan_in)
        w = jax.random.uniform(kw, w_shape, jnp.float32, -bound, bound)
        b = jax.random.uniform(kb, b_shape, jnp.float32, -bound, bound)
        return w, b

    w1, b1 = lin(ks[0], ks[1], d_in, (d_in, hidden_dim), (1, hidden_dim))
    w2, b2 = lin(ks[2], ks[3], hidden_dim, (hidden_dim, hidden_dim), (1, hidden_dim))
    # fc_out weight stored as a (1, hidden) row (see kernel).
    w3, b3 = lin(ks[4], ks[5], hidden_dim, (1, hidden_dim), (1, 1))
    return {"w1": w1, "b1": b1, "w2": w2, "b2": b2, "w3": w3, "b3": b3}


def _reference_forward(sl, al, mean_sf, mean_af, params):
    cat = jnp.concatenate([sl, al, mean_sf, mean_af], axis=-1).astype(jnp.float32)
    x = jnp.maximum(cat @ params["w1"] + params["b1"], 0.0)
    x = jnp.maximum(x @ params["w2"] + params["b2"], 0.0)
    return x @ params["w3"].T + params["b3"]


if __name__ == "__main__":
    # Small, forward-consistent shapes.
    batch = 8
    gov_state_dim = 8
    gov_action_dim = 4
    mean_state_dim = 8
    mean_action_dim = 4
    hidden_dim = 32

    key = jax.random.PRNGKey(0)
    k_sl, k_al, k_sf, k_af, k_p = jax.random.split(key, 5)

    sl = jax.random.normal(k_sl, (batch, gov_state_dim), jnp.float32)
    al = jax.random.normal(k_al, (batch, gov_action_dim), jnp.float32)
    mean_sf = jax.random.normal(k_sf, (batch, mean_state_dim), jnp.float32)
    mean_af = jax.random.normal(k_af, (batch, mean_action_dim), jnp.float32)

    params = init_params(k_p, gov_state_dim, gov_action_dim,
                         mean_state_dim, mean_action_dim, hidden_dim)

    ref = _reference_forward(sl, al, mean_sf, mean_af, params)

    # f32 path (tight check).
    out = bi_q_value_net_forward(sl, al, mean_sf, mean_af, params)
    out = jax.block_until_ready(out)
    assert out.shape == (batch, 1)
    assert jnp.allclose(out, ref, atol=1e-4, rtol=1e-4)

    # bf16-operand path (bandwidth-optimized for v6e/v7x); f32 accumulation.
    out_bf16 = bi_q_value_net_forward(sl, al, mean_sf, mean_af, params,
                                      compute_dtype=jnp.bfloat16)
    out_bf16 = jax.block_until_ready(out_bf16)
    assert out_bf16.shape == (batch, 1)
    assert jnp.allclose(out_bf16, ref, atol=1e-1, rtol=1e-1)

    print("KERNEL_OK")
</pallas_src>

<mosaic_0001>
module attributes {stable_mosaic.version = 11 : i64} {
  func.func @_mlp_kernel(%arg0: i32, %arg1: memref<8x8xf32, #tpu.memory_space<vmem>>, %arg2: memref<8x4xf32, #tpu.memory_space<vmem>>, %arg3: memref<8x8xf32, #tpu.memory_space<vmem>>, %arg4: memref<8x4xf32, #tpu.memory_space<vmem>>, %arg5: memref<8x32xf32, #tpu.memory_space<vmem>>, %arg6: memref<4x32xf32, #tpu.memory_space<vmem>>, %arg7: memref<8x32xf32, #tpu.memory_space<vmem>>, %arg8: memref<4x32xf32, #tpu.memory_space<vmem>>, %arg9: memref<1x32xf32, #tpu.memory_space<vmem>>, %arg10: memref<32x32xf32, #tpu.memory_space<vmem>>, %arg11: memref<1x32xf32, #tpu.memory_space<vmem>>, %arg12: memref<1x32xf32, #tpu.memory_space<vmem>>, %arg13: memref<1x1xf32, #tpu.memory_space<vmem>>, %arg14: memref<1x8xf32, #tpu.memory_space<vmem>>) attributes {dimension_semantics = [#tpu.dimension_semantics<parallel>], iteration_bounds = array<i64: 1>, scalar_prefetch = 0 : i64, scratch_operands = 0 : i64, tpu.core_type = #tpu.core_type<tc>, window_params = [{transform_indices = @transform_0, window_bounds = array<i64: 8, 8>}, {transform_indices = @transform_1, window_bounds = array<i64: 8, 4>}, {transform_indices = @transform_2, window_bounds = array<i64: 8, 8>}, {transform_indices = @transform_3, window_bounds = array<i64: 8, 4>}, {pipeline_mode = #tpu.pipeline_mode<synchronous>, transform_indices = @transform_4, window_bounds = array<i64: 8, 32>}, {pipeline_mode = #tpu.pipeline_mode<synchronous>, transform_indices = @transform_5, window_bounds = array<i64: 4, 32>}, {pipeline_mode = #tpu.pipeline_mode<synchronous>, transform_indices = @transform_6, window_bounds = array<i64: 8, 32>}, {pipeline_mode = #tpu.pipeline_mode<synchronous>, transform_indices = @transform_7, window_bounds = array<i64: 4, 32>}, {pipeline_mode = #tpu.pipeline_mode<synchronous>, transform_indices = @transform_8, window_bounds = array<i64: 1, 32>}, {pipeline_mode = #tpu.pipeline_mode<synchronous>, transform_indices = @transform_9, window_bounds = array<i64: 32, 32>}, {pipeline_mode = #tpu.pipeline_mode<synchronous>, transform_indices = @transform_10, window_bounds = array<i64: 1, 32>}, {pipeline_mode = #tpu.pipeline_mode<synchronous>, transform_indices = @transform_11, window_bounds = array<i64: 1, 32>}, {pipeline_mode = #tpu.pipeline_mode<synchronous>, transform_indices = @transform_12, window_bounds = array<i64: 1, 1>}, {transform_indices = @transform_13, window_bounds = array<i64: 1, 8>}]} {
    %c0 = arith.constant 0 : index
    %c0_0 = arith.constant 0 : index
    %0 = vector.load %arg1[%c0, %c0_0] : memref<8x8xf32, #tpu.memory_space<vmem>>, vector<8x8xf32>
    %c0_1 = arith.constant 0 : index
    %c0_2 = arith.constant 0 : index
    %1 = vector.load %arg5[%c0_1, %c0_2] : memref<8x32xf32, #tpu.memory_space<vmem>>, vector<8x32xf32>
    %cst = arith.constant dense<0.000000e+00> : vector<8x32xf32>
    %2 = tpu.matmul %0, %1, %cst {dimension_numbers = #tpu.dot_dimension_numbers<[1], [0], [0], [1], [0, 0, 1, 1], [], []>} : vector<8x8xf32>, vector<8x32xf32>, vector<8x32xf32> -> vector<8x32xf32>
    %c0_3 = arith.constant 0 : index
    %c0_4 = arith.constant 0 : index
    %3 = vector.load %arg2[%c0_3, %c0_4] : memref<8x4xf32, #tpu.memory_space<vmem>>, vector<8x4xf32>
    %c0_5 = arith.constant 0 : index
    %c0_6 = arith.constant 0 : index
    %4 = vector.load %arg6[%c0_5, %c0_6] : memref<4x32xf32, #tpu.memory_space<vmem>>, vector<4x32xf32>
    %cst_7 = arith.constant dense<0.000000e+00> : vector<8x32xf32>
    %5 = tpu.matmul %3, %4, %cst_7 {dimension_numbers = #tpu.dot_dimension_numbers<[1], [0], [0], [1], [0, 0, 1, 1], [], []>} : vector<8x4xf32>, vector<4x32xf32>, vector<8x32xf32> -> vector<8x32xf32>
    %6 = arith.addf %2, %5 : vector<8x32xf32>
    %c0_8 = arith.constant 0 : index
    %c0_9 = arith.constant 0 : index
    %7 = vector.load %arg3[%c0_8, %c0_9] : memref<8x8xf32, #tpu.memory_space<vmem>>, vector<8x8xf32>
    %c0_10 = arith.constant 0 : index
    %c0_11 = arith.constant 0 : index
    %8 = vector.load %arg7[%c0_10, %c0_11] : memref<8x32xf32, #tpu.memory_space<vmem>>, vector<8x32xf32>
    %cst_12 = arith.constant dense<0.000000e+00> : vector<8x32xf32>
    %9 = tpu.matmul %7, %8, %cst_12 {dimension_numbers = #tpu.dot_dimension_numbers<[1], [0], [0], [1], [0, 0, 1, 1], [], []>} : vector<8x8xf32>, vector<8x32xf32>, vector<8x32xf32> -> vector<8x32xf32>
    %10 = arith.addf %6, %9 : vector<8x32xf32>
    %c0_13 = arith.constant 0 : index
    %c0_14 = arith.constant 0 : index
    %11 = vector.load %arg4[%c0_13, %c0_14] : memref<8x4xf32, #tpu.memory_space<vmem>>, vector<8x4xf32>
    %c0_15 = arith.constant 0 : index
    %c0_16 = arith.constant 0 : index
    %12 = vector.load %arg8[%c0_15, %c0_16] : memref<4x32xf32, #tpu.memory_space<vmem>>, vector<4x32xf32>
    %cst_17 = arith.constant dense<0.000000e+00> : vector<8x32xf32>
    %13 = tpu.matmul %11, %12, %cst_17 {dimension_numbers = #tpu.dot_dimension_numbers<[1], [0], [0], [1], [0, 0, 1, 1], [], []>} : vector<8x4xf32>, vector<4x32xf32>, vector<8x32xf32> -> vector<8x32xf32>
    %14 = arith.addf %10, %13 : vector<8x32xf32>
    %c0_18 = arith.constant 0 : index
    %c0_19 = arith.constant 0 : index
    %15 = vector.load %arg9[%c0_18, %c0_19] : memref<1x32xf32, #tpu.memory_space<vmem>>, vector<1x32xf32>
    %16 = vector.broadcast %15 : vector<1x32xf32> to vector<8x32xf32>
    %17 = arith.addf %14, %16 : vector<8x32xf32>
    %cst_20 = arith.constant 0.000000e+00 : f32
    %18 = vector.broadcast %cst_20 : f32 to vector<8x32xf32>
    %19 = arith.maximumf %17, %18 : vector<8x32xf32>
    %c0_21 = arith.constant 0 : index
    %c0_22 = arith.constant 0 : index
    %20 = vector.load %arg10[%c0_21, %c0_22] : memref<32x32xf32, #tpu.memory_space<vmem>>, vector<32x32xf32>
    %cst_23 = arith.constant dense<0.000000e+00> : vector<8x32xf32>
    %21 = tpu.matmul %19, %20, %cst_23 {dimension_numbers = #tpu.dot_dimension_numbers<[1], [0], [0], [1], [0, 0, 1, 1], [], []>} : vector<8x32xf32>, vector<32x32xf32>, vector<8x32xf32> -> vector<8x32xf32>
    %c0_24 = arith.constant 0 : index
    %c0_25 = arith.constant 0 : index
    %22 = vector.load %arg11[%c0_24, %c0_25] : memref<1x32xf32, #tpu.memory_space<vmem>>, vector<1x32xf32>
    %23 = vector.broadcast %22 : vector<1x32xf32> to vector<8x32xf32>
    %24 = arith.addf %21, %23 : vector<8x32xf32>
    %cst_26 = arith.constant 0.000000e+00 : f32
    %25 = vector.broadcast %cst_26 : f32 to vector<8x32xf32>
    %26 = arith.maximumf %24, %25 : vector<8x32xf32>
    %c0_27 = arith.constant 0 : index
    %c0_28 = arith.constant 0 : index
    %27 = vector.load %arg12[%c0_27, %c0_28] : memref<1x32xf32, #tpu.memory_space<vmem>>, vector<1x32xf32>
    %cst_29 = arith.constant dense<0.000000e+00> : vector<1x8xf32>
    %28 = tpu.matmul %27, %26, %cst_29 {dimension_numbers = #tpu.dot_dimension_numbers<[1], [1], [0], [0], [0, 0, 1, 0], [], []>} : vector<1x32xf32>, vector<8x32xf32>, vector<1x8xf32> -> vector<1x8xf32>
    %c0_30 = arith.constant 0 : index
    %c0_31 = arith.constant 0 : index
    %29 = vector.load %arg13[%c0_30, %c0_31] : memref<1x1xf32, #tpu.memory_space<vmem>>, vector<1x1xf32>
    %30 = vector.broadcast %29 : vector<1x1xf32> to vector<1x8xf32>
    %31 = arith.addf %28, %30 : vector<1x8xf32>
    %c0_32 = arith.constant 0 : index
    %c0_33 = arith.constant 0 : index
    %32 = vector.load %arg14[%c0_32, %c0_33] : memref<1x8xf32, #tpu.memory_space<vmem>>, vector<1x8xf32>
    tpu.vector_store %arg14[%c0_32, %c0_33], %31 {strides = array<i32>} : memref<1x8xf32, #tpu.memory_space<vmem>>, vector<1x8xf32>,
    return
  }
  func.func @transform_0(%arg0: i32) -> (i32, i32) {
    %c0_i32 = arith.constant 0 : i32
    %c0_i32_0 = arith.constant 0 : i32
    return %arg0, %c0_i32 : i32, i32
  }
  func.func @transform_1(%arg0: i32) -> (i32, i32) {
    %c0_i32 = arith.constant 0 : i32
    %c0_i32_0 = arith.constant 0 : i32
    return %arg0, %c0_i32 : i32, i32
  }
  func.func @transform_2(%arg0: i32) -> (i32, i32) {
    %c0_i32 = arith.constant 0 : i32
    %c0_i32_0 = arith.constant 0 : i32
    return %arg0, %c0_i32 : i32, i32
  }
  func.func @transform_3(%arg0: i32) -> (i32, i32) {
    %c0_i32 = arith.constant 0 : i32
    %c0_i32_0 = arith.constant 0 : i32
    return %arg0, %c0_i32 : i32, i32
  }
  func.func @transform_4(%arg0: i32) -> (i32, i32) {
    %c0_i32 = arith.constant 0 : i32
    %c0_i32_0 = arith.constant 0 : i32
    %c0_i32_1 = arith.constant 0 : i32
    return %c0_i32, %c0_i32_0 : i32, i32
  }
  func.func @transform_5(%arg0: i32) -> (i32, i32) {
    %c0_i32 = arith.constant 0 : i32
    %c0_i32_0 = arith.constant 0 : i32
    %c0_i32_1 = arith.constant 0 : i32
    return %c0_i32, %c0_i32_0 : i32, i32
  }
  func.func @transform_6(%arg0: i32) -> (i32, i32) {
    %c0_i32 = arith.constant 0 : i32
    %c0_i32_0 = arith.constant 0 : i32
    %c0_i32_1 = arith.constant 0 : i32
    return %c0_i32, %c0_i32_0 : i32, i32
  }
  func.func @transform_7(%arg0: i32) -> (i32, i32) {
    %c0_i32 = arith.constant 0 : i32
    %c0_i32_0 = arith.constant 0 : i32
    %c0_i32_1 = arith.constant 0 : i32
    return %c0_i32, %c0_i32_0 : i32, i32
  }
  func.func @transform_8(%arg0: i32) -> (i32, i32) {
    %c0_i32 = arith.constant 0 : i32
    %c0_i32_0 = arith.constant 0 : i32
    %c0_i32_1 = arith.constant 0 : i32
    return %c0_i32, %c0_i32_0 : i32, i32
  }
  func.func @transform_9(%arg0: i32) -> (i32, i32) {
    %c0_i32 = arith.constant 0 : i32
    %c0_i32_0 = arith.constant 0 : i32
    %c0_i32_1 = arith.constant 0 : i32
    return %c0_i32, %c0_i32_0 : i32, i32
  }
  func.func @transform_10(%arg0: i32) -> (i32, i32) {
    %c0_i32 = arith.constant 0 : i32
    %c0_i32_0 = arith.constant 0 : i32
    %c0_i32_1 = arith.constant 0 : i32
    return %c0_i32, %c0_i32_0 : i32, i32
  }
  func.func @transform_11(%arg0: i32) -> (i32, i32) {
    %c0_i32 = arith.constant 0 : i32
    %c0_i32_0 = arith.constant 0 : i32
    %c0_i32_1 = arith.constant 0 : i32
    return %c0_i32, %c0_i32_0 : i32, i32
  }
  func.func @transform_12(%arg0: i32) -> (i32, i32) {
    %c0_i32 = arith.constant 0 : i32
    %c0_i32_0 = arith.constant 0 : i32
    %c0_i32_1 = arith.constant 0 : i32
    return %c0_i32, %c0_i32_0 : i32, i32
  }
  func.func @transform_13(%arg0: i32) -> (i32, i32) {
    %c0_i32 = arith.constant 0 : i32
    %c0_i32_0 = arith.constant 0 : i32
    return %c0_i32, %arg0 : i32, i32
  }
}

</mosaic_0001>

<llo_original>
// kernel: tpu_custom_call.1
$region0: #{tpu_custom_call.1}
  #allocation0 [shape = 'u32[]', space=smem, size = 0x4, offset = 0x4, fixed_abs, tag = 'smem constant byte address 0x4 - core index']
  #allocation1 [shape = 'u32[144,128]{1,0:T(1,128)}', space=vmem, size = 0x12000, scoped, tag = 'internal scratch']
  #allocation2 [shape = 'f32[1,1]{1,0:T(1,128)S(1)}', space=vmem, size = 0x200, scoped, tag = 'scoped memory for tpu_custom_call.1']
  %s0 = inlined_call_operand.vmem [shape: f32[8,8], index: 0, kind: input, shape index: {}]
  %s1 = inlined_call_operand.vmem [shape: f32[8,4], index: 1, kind: input, shape index: {}]
  %s2 = inlined_call_operand.hbm [shape: f32[8,8], index: 2, kind: input, shape index: {}]
  %s3 = inlined_call_operand.vmem [shape: f32[8,4], index: 3, kind: input, shape index: {}]
  %s4 = inlined_call_operand.hbm [shape: f32[8,32], index: 4, kind: input, shape index: {}]
  %s5 = inlined_call_operand.hbm [shape: f32[4,32], index: 5, kind: input, shape index: {}]
  %s6 = inlined_call_operand.hbm [shape: f32[8,32], index: 6, kind: input, shape index: {}]
  %s7 = inlined_call_operand.hbm [shape: f32[4,32], index: 7, kind: input, shape index: {}]
  %s8 = inlined_call_operand.vmem [shape: f32[1,32], index: 8, kind: input, shape index: {}]
  %s9 = inlined_call_operand.vmem [shape: f32[32,32], index: 9, kind: input, shape index: {}]
  %s10 = inlined_call_operand.vmem [shape: f32[1,32], index: 10, kind: input, shape index: {}]
  %s11 = inlined_call_operand.vmem [shape: f32[1,32], index: 11, kind: input, shape index: {}]
  %s12 = inlined_call_operand.<no memory space> [shape: f32[1,1], index: 12, kind: input, shape index: {}]
  %s13 = inlined_call_operand.hbm [shape: f32[1,8], index: 13, kind: output, shape index: {}]
  %s14 = sld [smem:[#allocation0]]
  $region82: #{tpu_custom_call.1} parent=0
    _
  %s16 = ssub.s32 1, %s14
  %s17 = scalar_select 0, %s16, %s14
  %v18 = vstv %s12
  %19 = vst [vmem:[#allocation2] sm:$0x1] %v18
  $region1: #{tpu_custom_call.1} parent=0
    #allocation3 [shape = 'u8[4096]{0}', space=vmem, size = 0x1000, scoped, tag = 'input window, operand 2, single buffered']
    #allocation4 [shape = 's32[1]{0}', space=sflag, size = 0x4, scoped, tag = 'scoped memory for tpu_custom_call.1']
    #allocation5 [shape = 's32[1]{0}', space=sflag, size = 0x4, scoped, tag = 'scoped memory for tpu_custom_call.1']
    #allocation6 [shape = 'u8[4096]{0}', space=vmem, size = 0x1000, scoped, tag = 'input window, operand 4, single buffered']
    #allocation7 [shape = 's32[1]{0}', space=sflag, size = 0x4, scoped, tag = 'scoped memory for tpu_custom_call.1']
    #allocation8 [shape = 'u8[2048]{0}', space=vmem, size = 0x800, scoped, tag = 'input window, operand 5, single buffered']
    #allocation9 [shape = 'u8[4096]{0}', space=vmem, size = 0x1000, scoped, tag = 'input window, operand 6, single buffered']
    #allocation10 [shape = 's32[1]{0}', space=sflag, size = 0x4, scoped, tag = 'scoped memory for tpu_custom_call.1']
    #allocation11 [shape = 'u8[2048]{0}', space=vmem, size = 0x800, scoped, tag = 'input window, operand 7, single buffered']
    #allocation12 [shape = 'u8[512]{0}', space=vmem, size = 0x400, scoped, tag = 'output window, operand 0, single buffered']
    %20 = vsyncpa [#allocation4], 0
    %21 = vsyncpa [#allocation7], 0
    %22 = vsyncpa [#allocation10], 0
    %23 = vsyncpa [#allocation5], 0
    // Predicated region
    $region2: #{tpu_custom_call.1} parent=1 // pred_check
      _
    $region3: #{tpu_custom_call.1} parent=1 // pred_check_branch
      %25 = sbr.rel (0) target = $region5
    $region4: #{tpu_custom_call.1} parent=1 // pred_region
      _
    $region5: #{tpu_custom_call.1} parent=1 // pred_fallthru
      _
    // Predicated region
    $region6: #{tpu_custom_call.1} parent=1 // pred_check
      _
    $region7: #{tpu_custom_call.1} parent=1 // pred_check_branch
      %27 = sbr.rel (0) target = $region9
    $region8: #{tpu_custom_call.1} parent=1 // pred_region
      _
    $region9: #{tpu_custom_call.1} parent=1 // pred_fallthru
      _
    // Predicated region
    $region10: #{tpu_custom_call.1} parent=1 // pred_check
      _
    $region11: #{tpu_custom_call.1} parent=1 // pred_check_branch
      %29 = sbr.rel (0) target = $region13
    $region12: #{tpu_custom_call.1} parent=1 // pred_region
      %s31 = ssub.s32 128, 128
      %32 = vsyncadd [#allocation4], %s31
      %s34 = sshll.u32 [#allocation3], 4
      %s35 = int_to_ptr.vmem [resolvable:$true] %s34
      %37 = dma.hbm_to_vmem [thread:$0]  %s2, 128, %s35, [#allocation4]
    $region13: #{tpu_custom_call.1} parent=1 // pred_fallthru
      _
    // Predicated region
    $region14: #{tpu_custom_call.1} parent=1 // pred_check
      _
    $region15: #{tpu_custom_call.1} parent=1 // pred_check_branch
      %39 = sbr.rel (0) target = $region17
    $region16: #{tpu_custom_call.1} parent=1 // pred_region
      _
    $region17: #{tpu_custom_call.1} parent=1 // pred_fallthru
      _
    // Predicated region
    $region18: #{tpu_custom_call.1} parent=1 // pred_check
      _
    $region19: #{tpu_custom_call.1} parent=1 // pred_check_branch
      %41 = sbr.rel (0) target = $region21
    $region20: #{tpu_custom_call.1} parent=1 // pred_region
      %s43 = ssub.s32 128, 128
      %44 = vsyncadd [#allocation7], %s43
      %s46 = sshll.u32 [#allocation6], 4
      %s47 = int_to_ptr.vmem [resolvable:$true] %s46
      %49 = dma.hbm_to_vmem [thread:$0]  %s4, 128, %s47, [#allocation7]
    $region21: #{tpu_custom_call.1} parent=1 // pred_fallthru
      _
    // Predicated region
    $region22: #{tpu_custom_call.1} parent=1 // pred_check
      _
    $region23: #{tpu_custom_call.1} parent=1 // pred_check_branch
      %51 = sbr.rel (0) target = $region25
    $region24: #{tpu_custom_call.1} parent=1 // pred_region
      %s53 = ssub.s32 64, 64
      %54 = vsyncadd [#allocation7], %s53
      %s56 = sshll.u32 [#allocation8], 4
      %s57 = int_to_ptr.vmem [resolvable:$true] %s56
      %59 = dma.hbm_to_vmem [thread:$0]  %s5, 64, %s57, [#allocation7]
    $region25: #{tpu_custom_call.1} parent=1 // pred_fallthru
      _
    // Predicated region
    $region26: #{tpu_custom_call.1} parent=1 // pred_check
      _
    $region27: #{tpu_custom_call.1} parent=1 // pred_check_branch
      %61 = sbr.rel (0) target = $region29
    $region28: #{tpu_custom_call.1} parent=1 // pred_region
      %s63 = ssub.s32 128, 128
      %64 = vsyncadd [#allocation10], %s63
      %s66 = sshll.u32 [#allocation9], 4
      %s67 = int_to_ptr.vmem [resolvable:$true] %s66
      %69 = dma.hbm_to_vmem [thread:$0]  %s6, 128, %s67, [#allocation10]
    $region29: #{tpu_custom_call.1} parent=1 // pred_fallthru
      _
    // Predicated region
    $region30: #{tpu_custom_call.1} parent=1 // pred_check
      _
    $region31: #{tpu_custom_call.1} parent=1 // pred_check_branch
      %71 = sbr.rel (0) target = $region33
    $region32: #{tpu_custom_call.1} parent=1 // pred_region
      %s73 = ssub.s32 64, 64
      %74 = vsyncadd [#allocation10], %s73
      %s76 = sshll.u32 [#allocation11], 4
      %s77 = int_to_ptr.vmem [resolvable:$true] %s76
      %79 = dma.hbm_to_vmem [thread:$0]  %s7, 64, %s77, [#allocation10]
    $region33: #{tpu_custom_call.1} parent=1 // pred_fallthru
      _
    // Predicated region
    $region34: #{tpu_custom_call.1} parent=1 // pred_check
      _
    $region35: #{tpu_custom_call.1} parent=1 // pred_check_branch
      %81 = sbr.rel (0) target = $region37
    $region36: #{tpu_custom_call.1} parent=1 // pred_region
      _
    $region37: #{tpu_custom_call.1} parent=1 // pred_fallthru
      _
    // Predicated region
    $region38: #{tpu_custom_call.1} parent=1 // pred_check
      _
    $region39: #{tpu_custom_call.1} parent=1 // pred_check_branch
      %83 = sbr.rel (0) target = $region41
    $region40: #{tpu_custom_call.1} parent=1 // pred_region
      _
    $region41: #{tpu_custom_call.1} parent=1 // pred_fallthru
      _
    // Predicated region
    $region42: #{tpu_custom_call.1} parent=1 // pred_check
      _
    $region43: #{tpu_custom_call.1} parent=1 // pred_check_branch
      %85 = sbr.rel (0) target = $region45
    $region44: #{tpu_custom_call.1} parent=1 // pred_region
      _
    $region45: #{tpu_custom_call.1} parent=1 // pred_fallthru
      _
    // Predicated region
    $region46: #{tpu_custom_call.1} parent=1 // pred_check
      _
    $region47: #{tpu_custom_call.1} parent=1 // pred_check_branch
      %87 = sbr.rel (0) target = $region49
    $region48: #{tpu_custom_call.1} parent=1 // pred_region
      _
    $region49: #{tpu_custom_call.1} parent=1 // pred_fallthru
      _
    // Predicated region
    $region50: #{tpu_custom_call.1} parent=1 // pred_check
      _
    $region51: #{tpu_custom_call.1} parent=1 // pred_check_branch
      %89 = sbr.rel (0) target = $region53
    $region52: #{tpu_custom_call.1} parent=1 // pred_region
      _
    $region53: #{tpu_custom_call.1} parent=1 // pred_fallthru
      _
    // Predicated region
    $region54: #{tpu_custom_call.1} parent=1 // pred_check
      _
    $region55: #{tpu_custom_call.1} parent=1 // pred_check_branch
      %91 = sbr.rel (0) target = $region57
    $region56: #{tpu_custom_call.1} parent=1 // pred_region
      %92 = dma.done [#allocation4], 128
    $region57: #{tpu_custom_call.1} parent=1 // pred_fallthru
      _
    // Predicated region
    $region58: #{tpu_custom_call.1} parent=1 // pred_check
      _
    $region59: #{tpu_custom_call.1} parent=1 // pred_check_branch
      %94 = sbr.rel (0) target = $region61
    $region60: #{tpu_custom_call.1} parent=1 // pred_region
      %95 = dma.done [#allocation7], 128
    $region61: #{tpu_custom_call.1} parent=1 // pred_fallthru
      _
    // Predicated region
    $region62: #{tpu_custom_call.1} parent=1 // pred_check
      _
    $region63: #{tpu_custom_call.1} parent=1 // pred_check_branch
      %97 = sbr.rel (0) target = $region65
    $region64: #{tpu_custom_call.1} parent=1 // pred_region
      %98 = dma.done [#allocation7], 64
    $region65: #{tpu_custom_call.1} parent=1 // pred_fallthru
      _
    // Predicated region
    $region66: #{tpu_custom_call.1} parent=1 // pred_check
      _
    $region67: #{tpu_custom_call.1} parent=1 // pred_check_branch
      %100 = sbr.rel (0) target = $region69
    $region68: #{tpu_custom_call.1} parent=1 // pred_region
      %101 = dma.done [#allocation10], 128
    $region69: #{tpu_custom_call.1} parent=1 // pred_fallthru
      _
    // Predicated region
    $region70: #{tpu_custom_call.1} parent=1 // pred_check
      _
    $region71: #{tpu_custom_call.1} parent=1 // pred_check_branch
      %103 = sbr.rel (0) target = $region73
    $region72: #{tpu_custom_call.1} parent=1 // pred_region
      %104 = dma.done [#allocation10], 64
    $region73: #{tpu_custom_call.1} parent=1 // pred_fallthru
      _
    %v105 = vld [vmem:[%s0] sm:$0xff]
    %v106 = vld [vmem:[#allocation6] sm:$0xff]
    %v107 = vld [vmem:[%s1] sm:$0xff]
    %v108 = vld [vmem:[#allocation8] sm:$0xf]
    %vm109 = vcmask 31744
    %v111 = vsel %vm109, %v107, 0
    %vm113 = vcmask 1043456
    %v115 = vsel %vm113, %v108, 0
    %117 = vmatprep.subr.mxu0 0.0
    %118 = vmatpush1.msra.mxu0 0.0
    %119 = vmatprep.subr.mxu0 0.0
    %120 = vmatpush1.msra.mxu0 0.0
    %121 = vmatprep.subr.mxu0 0.0
    %122 = vmatpush1.msra.mxu0 0.0
    %123 = vmatprep.subr.mxu0 0.0
    %124 = vmatpush1.msra.mxu0 0.0
    %125 = vmatprep.subr.mxu0 0.0
    %126 = vmatpush1.msra.mxu0 0.0
    %127 = vmatprep.subr.mxu0 0.0
    %128 = vmatpush1.msra.mxu0 0.0
    %129 = vmatprep.subr.mxu0 0.0
    %130 = vmatpush1.msra.mxu0 0.0
    %131 = vmatprep.subr.mxu0 0.0
    %132 = vmatpush1.msra.mxu0 0.0
    %133 = vmatprep.subr.mxu0 0.0
    %134 = vmatpush1.msra.mxu0 0.0
    %135 = vmatprep.subr.mxu0 0.0
    %136 = vmatpush1.msra.mxu0 0.0
    %137 = vmatprep.subr.mxu0 0.0
    %138 = vmatpush1.msra.mxu0 0.0
    %139 = vmatprep.subr.mxu0 0.0
    %140 = vmatpush1.msra.mxu0 0.0
    %141 = vmatprep.subr.mxu0 0.0
    %142 = vmatpush1.msra.mxu0 0.0
    %143 = vmatprep.subr.mxu0 0.0
    %144 = vmatpush1.msra.mxu0 0.0
    %145 = vmatprep.subr.mxu0 0.0
    %146 = vmatpush1.msra.mxu0 0.0
    %147 = vmatprep.subr.mxu0 0.0
    %148 = vmatpush1.msra.mxu0 %v115
    %149 = vmatprep.subr.mxu0 0.0
    %150 = vmatpush2.msra.mxu0 0.0
    %151 = vmatprep.subr.mxu0 0.0
    %152 = vmatpush2.msra.mxu0 0.0
    %153 = vmatprep.subr.mxu0 0.0
    %154 = vmatpush2.msra.mxu0 0.0
    %155 = vmatprep.subr.mxu0 0.0
    %156 = vmatpush2.msra.mxu0 0.0
    %157 = vmatprep.subr.mxu0 0.0
    %158 = vmatpush2.msra.mxu0 0.0
    %159 = vmatprep.subr.mxu0 0.0
    %160 = vmatpush2.msra.mxu0 0.0
    %161 = vmatprep.subr.mxu0 0.0
    %162 = vmatpush2.msra.mxu0 0.0
    %163 = vmatprep.subr.mxu0 0.0
    %164 = vmatpush2.msra.mxu0 0.0
    %165 = vmatprep.subr.mxu0 0.0
    %166 = vmatpush2.msra.mxu0 0.0
    %167 = vmatprep.subr.mxu0 0.0
    %168 = vmatpush2.msra.mxu0 0.0
    %169 = vmatprep.subr.mxu0 0.0
    %170 = vmatpush2.msra.mxu0 0.0
    %171 = vmatprep.subr.mxu0 0.0
    %172 = vmatpush2.msra.mxu0 0.0
    %173 = vmatprep.subr.mxu0 0.0
    %174 = vmatpush2.msra.mxu0 0.0
    %175 = vmatprep.subr.mxu0 0.0
    %176 = vmatpush2.msra.mxu0 0.0
    %177 = vmatprep.subr.mxu0 0.0
    %178 = vmatpush2.msra.mxu0 0.0
    %179 = vmatprep.subr.mxu0 0.0
    %180 = vmatpush2.msra.mxu0 0.0
    %181 = vmatprep.mubr.f32.mxu0 0.0
    %182 = vmatmul.mubr.f32.gmra.mxu0 %v111
    %v183 = vpop.f32.mrf.mxu0
    %v184 = vadd.f32 0.0, %v183
    %v185 = vpop.f32.mrf.mxu0
    %186 = vdwg.mxu0
    %vm187 = vcmask 64512
    %v189 = vsel %vm187, %v105, 0
    %191 = vmatprep.subr.mxu0 0.0
    %192 = vmatpush1.msra.mxu0 0.0
    %193 = vmatprep.subr.mxu0 0.0
    %194 = vmatpush1.msra.mxu0 0.0
    %195 = vmatprep.subr.mxu0 0.0
    %196 = vmatpush1.msra.mxu0 0.0
    %197 = vmatprep.subr.mxu0 0.0
    %198 = vmatpush1.msra.mxu0 0.0
    %199 = vmatprep.subr.mxu0 0.0
    %200 = vmatpush1.msra.mxu0 0.0
    %201 = vmatprep.subr.mxu0 0.0
    %202 = vmatpush1.msra.mxu0 0.0
    %203 = vmatprep.subr.mxu0 0.0
    %204 = vmatpush1.msra.mxu0 0.0
    %205 = vmatprep.subr.mxu0 0.0
    %206 = vmatpush1.msra.mxu0 0.0
    %207 = vmatprep.subr.mxu0 0.0
    %208 = vmatpush1.msra.mxu0 0.0
    %209 = vmatprep.subr.mxu0 0.0
    %210 = vmatpush1.msra.mxu0 0.0
    %211 = vmatprep.subr.mxu0 0.0
    %212 = vmatpush1.msra.mxu0 0.0
    %213 = vmatprep.subr.mxu0 0.0
    %214 = vmatpush1.msra.mxu0 0.0
    %215 = vmatprep.subr.mxu0 0.0
    %216 = vmatpush1.msra.mxu0 0.0
    %217 = vmatprep.subr.mxu0 0.0
    %218 = vmatpush1.msra.mxu0 0.0
    %219 = vmatprep.subr.mxu0 0.0
    %220 = vmatpush1.msra.mxu0 0.0
    %221 = vmatprep.subr.mxu0 0.0
    %222 = vmatpush1.msra.mxu0 %v106
    %223 = vmatprep.subr.mxu0 0.0
    %224 = vmatpush2.msra.mxu0 0.0
    %225 = vmatprep.subr.mxu0 0.0
    %226 = vmatpush2.msra.mxu0 0.0
    %227 = vmatprep.subr.mxu0 0.0
    %228 = vmatpush2.msra.mxu0 0.0
    %229 = vmatprep.subr.mxu0 0.0
    %230 = vmatpush2.msra.mxu0 0.0
    %231 = vmatprep.subr.mxu0 0.0
    %232 = vmatpush2.msra.mxu0 0.0
    %233 = vmatprep.subr.mxu0 0.0
    %234 = vmatpush2.msra.mxu0 0.0
    %235 = vmatprep.subr.mxu0 0.0
    %236 = vmatpush2.msra.mxu0 0.0
    %237 = vmatprep.subr.mxu0 0.0
    %238 = vmatpush2.msra.mxu0 0.0
    %239 = vmatprep.subr.mxu0 0.0
    %240 = vmatpush2.msra.mxu0 0.0
    %241 = vmatprep.subr.mxu0 0.0
    %242 = vmatpush2.msra.mxu0 0.0
    %243 = vmatprep.subr.mxu0 0.0
    %244 = vmatpush2.msra.mxu0 0.0
    %245 = vmatprep.subr.mxu0 0.0
    %246 = vmatpush2.msra.mxu0 0.0
    %247 = vmatprep.subr.mxu0 0.0
    %248 = vmatpush2.msra.mxu0 0.0
    %249 = vmatprep.subr.mxu0 0.0
    %250 = vmatpush2.msra.mxu0 0.0
    %251 = vmatprep.subr.mxu0 0.0
    %252 = vmatpush2.msra.mxu0 0.0
    %253 = vmatprep.subr.mxu0 0.0
    %254 = vmatpush2.msra.mxu0 0.0
    %255 = vmatprep.mubr.f32.mxu0 0.0
    %256 = vmatmul.mubr.f32.gmra.mxu0 %v189
    %v257 = vpop.f32.mrf.mxu0
    %v258 = vadd.f32 %v184, %v257
    %v259 = vpop.f32.mrf.mxu0
    %260 = vdwg.mxu0
    %v261 = vld [vmem:[#allocation3] sm:$0xff]
    %v262 = vld [vmem:[#allocation9] sm:$0xff]
    %v264 = vsel %vm187, %v261, 0
    %266 = vmatprep.subr.mxu0 0.0
    %267 = vmatpush1.msra.mxu0 0.0
    %268 = vmatprep.subr.mxu0 0.0
    %269 = vmatpush1.msra.mxu0 0.0
    %270 = vmatprep.subr.mxu0 0.0
    %271 = vmatpush1.msra.mxu0 0.0
    %272 = vmatprep.subr.mxu0 0.0
    %273 = vmatpush1.msra.mxu0 0.0
    %274 = vmatprep.subr.mxu0 0.0
    %275 = vmatpush1.msra.mxu0 0.0
    %276 = vmatprep.subr.mxu0 0.0
    %277 = vmatpush1.msra.mxu0 0.0
    %278 = vmatprep.subr.mxu0 0.0
    %279 = vmatpush1.msra.mxu0 0.0
    %280 = vmatprep.subr.mxu0 0.0
    %281 = vmatpush1.msra.mxu0 0.0
    %282 = vmatprep.subr.mxu0 0.0
    %283 = vmatpush1.msra.mxu0 0.0
    %284 = vmatprep.subr.mxu0 0.0
    %285 = vmatpush1.msra.mxu0 0.0
    %286 = vmatprep.subr.mxu0 0.0
    %287 = vmatpush1.msra.mxu0 0.0
    %288 = vmatprep.subr.mxu0 0.0
    %289 = vmatpush1.msra.mxu0 0.0
    %290 = vmatprep.subr.mxu0 0.0
    %291 = vmatpush1.msra.mxu0 0.0
    %292 = vmatprep.subr.mxu0 0.0
    %293 = vmatpush1.msra.mxu0 0.0
    %294 = vmatprep.subr.mxu0 0.0
    %295 = vmatpush1.msra.mxu0 0.0
    %296 = vmatprep.subr.mxu0 0.0
    %297 = vmatpush1.msra.mxu0 %v262
    %298 = vmatprep.subr.mxu0 0.0
    %299 = vmatpush2.msra.mxu0 0.0
    %300 = vmatprep.subr.mxu0 0.0
    %301 = vmatpush2.msra.mxu0 0.0
    %302 = vmatprep.subr.mxu0 0.0
    %303 = vmatpush2.msra.mxu0 0.0
    %304 = vmatprep.subr.mxu0 0.0
    %305 = vmatpush2.msra.mxu0 0.0
    %306 = vmatprep.subr.mxu0 0.0
    %307 = vmatpush2.msra.mxu0 0.0
    %308 = vmatprep.subr.mxu0 0.0
    %309 = vmatpush2.msra.mxu0 0.0
    %310 = vmatprep.subr.mxu0 0.0
    %311 = vmatpush2.msra.mxu0 0.0
    %312 = vmatprep.subr.mxu0 0.0
    %313 = vmatpush2.msra.mxu0 0.0
    %314 = vmatprep.subr.mxu0 0.0
    %315 = vmatpush2.msra.mxu0 0.0
    %316 = vmatprep.subr.mxu0 0.0
    %317 = vmatpush2.msra.mxu0 0.0
    %318 = vmatprep.subr.mxu0 0.0
    %319 = vmatpush2.msra.mxu0 0.0
    %320 = vmatprep.subr.mxu0 0.0
    %321 = vmatpush2.msra.mxu0 0.0
    %322 = vmatprep.subr.mxu0 0.0
    %323 = vmatpush2.msra.mxu0 0.0
    %324 = vmatprep.subr.mxu0 0.0
    %325 = vmatpush2.msra.mxu0 0.0
    %326 = vmatprep.subr.mxu0 0.0
    %327 = vmatpush2.msra.mxu0 0.0
    %328 = vmatprep.subr.mxu0 0.0
    %329 = vmatpush2.msra.mxu0 0.0
    %330 = vmatprep.mubr.f32.mxu0 0.0
    %331 = vmatmul.mubr.f32.gmra.mxu0 %v264
    %v332 = vpop.f32.mrf.mxu0
    %v333 = vadd.f32 0.0, %v332
    %v334 = vpop.f32.mrf.mxu0
    %335 = vdwg.mxu0
    %v336 = vadd.f32 %v258, %v333
    %v337 = vld [vmem:[%s3] sm:$0xff]
    %v338 = vld [vmem:[#allocation11] sm:$0xf]
    %v340 = vsel %vm109, %v337, 0
    %v343 = vsel %vm113, %v338, 0
    %345 = vmatprep.subr.mxu0 0.0
    %346 = vmatpush1.msra.mxu0 0.0
    %347 = vmatprep.subr.mxu0 0.0
    %348 = vmatpush1.msra.mxu0 0.0
    %349 = vmatprep.subr.mxu0 0.0
    %350 = vmatpush1.msra.mxu0 0.0
    %351 = vmatprep.subr.mxu0 0.0
    %352 = vmatpush1.msra.mxu0 0.0
    %353 = vmatprep.subr.mxu0 0.0
    %354 = vmatpush1.msra.mxu0 0.0
    %355 = vmatprep.subr.mxu0 0.0
    %356 = vmatpush1.msra.mxu0 0.0
    %357 = vmatprep.subr.mxu0 0.0
    %358 = vmatpush1.msra.mxu0 0.0
    %359 = vmatprep.subr.mxu0 0.0
    %360 = vmatpush1.msra.mxu0 0.0
    %361 = vmatprep.subr.mxu0 0.0
    %362 = vmatpush1.msra.mxu0 0.0
    %363 = vmatprep.subr.mxu0 0.0
    %364 = vmatpush1.msra.mxu0 0.0
    %365 = vmatprep.subr.mxu0 0.0
    %366 = vmatpush1.msra.mxu0 0.0
    %367 = vmatprep.subr.mxu0 0.0
    %368 = vmatpush1.msra.mxu0 0.0
    %369 = vmatprep.subr.mxu0 0.0
    %370 = vmatpush1.msra.mxu0 0.0
    %371 = vmatprep.subr.mxu0 0.0
    %372 = vmatpush1.msra.mxu0 0.0
    %373 = vmatprep.subr.mxu0 0.0
    %374 = vmatpush1.msra.mxu0 0.0
    %375 = vmatprep.subr.mxu0 0.0
    %376 = vmatpush1.msra.mxu0 %v343
    %377 = vmatprep.subr.mxu0 0.0
    %378 = vmatpush2.msra.mxu0 0.0
    %379 = vmatprep.subr.mxu0 0.0
    %380 = vmatpush2.msra.mxu0 0.0
    %381 = vmatprep.subr.mxu0 0.0
    %382 = vmatpush2.msra.mxu0 0.0
    %383 = vmatprep.subr.mxu0 0.0
    %384 = vmatpush2.msra.mxu0 0.0
    %385 = vmatprep.subr.mxu0 0.0
    %386 = vmatpush2.msra.mxu0 0.0
    %387 = vmatprep.subr.mxu0 0.0
    %388 = vmatpush2.msra.mxu0 0.0
    %389 = vmatprep.subr.mxu0 0.0
    %390 = vmatpush2.msra.mxu0 0.0
    %391 = vmatprep.subr.mxu0 0.0
    %392 = vmatpush2.msra.mxu0 0.0
    %393 = vmatprep.subr.mxu0 0.0
    %394 = vmatpush2.msra.mxu0 0.0
    %395 = vmatprep.subr.mxu0 0.0
    %396 = vmatpush2.msra.mxu0 0.0
    %397 = vmatprep.subr.mxu0 0.0
    %398 = vmatpush2.msra.mxu0 0.0
    %399 = vmatprep.subr.mxu0 0.0
    %400 = vmatpush2.msra.mxu0 0.0
    %401 = vmatprep.subr.mxu0 0.0
    %402 = vmatpush2.msra.mxu0 0.0
    %403 = vmatprep.subr.mxu0 0.0
    %404 = vmatpush2.msra.mxu0 0.0
    %405 = vmatprep.subr.mxu0 0.0
    %406 = vmatpush2.msra.mxu0 0.0
    %407 = vmatprep.subr.mxu0 0.0
    %408 = vmatpush2.msra.mxu0 0.0
    %409 = vmatprep.mubr.f32.mxu0 0.0
    %410 = vmatmul.mubr.f32.gmra.mxu0 %v340
    %v411 = vpop.f32.mrf.mxu0
    %v412 = vadd.f32 0.0, %v411
    %v413 = vpop.f32.mrf.mxu0
    %414 = vdwg.mxu0
    %v415 = vadd.f32 %v336, %v412
    %v416 = vld [vmem:[%s8] sm:$0x1]
    %v418 = vlaneseq
    %v419 = vshrl.u32 %v418, 7
    %v420 = vsub.s32 0, %v419
    %v421 = vrot.slane %v416, %v420
    %v423 = vadd.f32 %v415, %v421
    %v424 = vmax.f32 %v423, 0.0
    %v425 = vld [vmem:[%s9] sm:$0xff]
    %v426 = vld [vmem:[%s9 + $0x8] sm:$0xff]
    %v427 = vld [vmem:[%s9 + $0x10] sm:$0xff]
    %v428 = vld [vmem:[%s9 + $0x18] sm:$0xff]
    %v429 = vld [vmem:[%s10] sm:$0x1]
    %v431 = vlaneseq
    %v432 = vshrl.u32 %v431, 7
    %v433 = vsub.s32 0, %v432
    %v434 = vrot.slane %v429, %v433
    %vm436 = vcmask 261120
    %v438 = vsel %vm436, %v424, 0
    %440 = vmatprep.subr.mxu0 0.0
    %441 = vmatpush1.msra.mxu0 0.0
    %442 = vmatprep.subr.mxu0 0.0
    %443 = vmatpush1.msra.mxu0 0.0
    %444 = vmatprep.subr.mxu0 0.0
    %445 = vmatpush1.msra.mxu0 0.0
    %446 = vmatprep.subr.mxu0 0.0
    %447 = vmatpush1.msra.mxu0 0.0
    %448 = vmatprep.subr.mxu0 0.0
    %449 = vmatpush1.msra.mxu0 0.0
    %450 = vmatprep.subr.mxu0 0.0
    %451 = vmatpush1.msra.mxu0 0.0
    %452 = vmatprep.subr.mxu0 0.0
    %453 = vmatpush1.msra.mxu0 0.0
    %454 = vmatprep.subr.mxu0 0.0
    %455 = vmatpush1.msra.mxu0 0.0
    %456 = vmatprep.subr.mxu0 0.0
    %457 = vmatpush1.msra.mxu0 0.0
    %458 = vmatprep.subr.mxu0 0.0
    %459 = vmatpush1.msra.mxu0 0.0
    %460 = vmatprep.subr.mxu0 0.0
    %461 = vmatpush1.msra.mxu0 0.0
    %462 = vmatprep.subr.mxu0 0.0
    %463 = vmatpush1.msra.mxu0 0.0
    %464 = vmatprep.subr.mxu0 0.0
    %465 = vmatpush1.msra.mxu0 %v428
    %466 = vmatprep.subr.mxu0 0.0
    %467 = vmatpush1.msra.mxu0 %v427
    %468 = vmatprep.subr.mxu0 0.0
    %469 = vmatpush1.msra.mxu0 %v426
    %470 = vmatprep.subr.mxu0 0.0
    %471 = vmatpush1.msra.mxu0 %v425
    %472 = vmatprep.subr.mxu0 0.0
    %473 = vmatpush2.msra.mxu0 0.0
    %474 = vmatprep.subr.mxu0 0.0
    %475 = vmatpush2.msra.mxu0 0.0
    %476 = vmatprep.subr.mxu0 0.0
    %477 = vmatpush2.msra.mxu0 0.0
    %478 = vmatprep.subr.mxu0 0.0
    %479 = vmatpush2.msra.mxu0 0.0
    %480 = vmatprep.subr.mxu0 0.0
    %481 = vmatpush2.msra.mxu0 0.0
    %482 = vmatprep.subr.mxu0 0.0
    %483 = vmatpush2.msra.mxu0 0.0
    %484 = vmatprep.subr.mxu0 0.0
    %485 = vmatpush2.msra.mxu0 0.0
    %486 = vmatprep.subr.mxu0 0.0
    %487 = vmatpush2.msra.mxu0 0.0
    %488 = vmatprep.subr.mxu0 0.0
    %489 = vmatpush2.msra.mxu0 0.0
    %490 = vmatprep.subr.mxu0 0.0
    %491 = vmatpush2.msra.mxu0 0.0
    %492 = vmatprep.subr.mxu0 0.0
    %493 = vmatpush2.msra.mxu0 0.0
    %494 = vmatprep.subr.mxu0 0.0
    %495 = vmatpush2.msra.mxu0 0.0
    %496 = vmatprep.subr.mxu0 0.0
    %497 = vmatpush2.msra.mxu0 0.0
    %498 = vmatprep.subr.mxu0 0.0
    %499 = vmatpush2.msra.mxu0 0.0
    %500 = vmatprep.subr.mxu0 0.0
    %501 = vmatpush2.msra.mxu0 0.0
    %502 = vmatprep.subr.mxu0 0.0
    %503 = vmatpush2.msra.mxu0 0.0
    %504 = vmatprep.mubr.f32.mxu0 0.0
    %505 = vmatmul.mubr.f32.gmra.mxu0 %v438
    %v506 = vpop.f32.mrf.mxu0
    %v507 = vadd.f32 %v434, %v506
    %v508 = vpop.f32.mrf.mxu0
    %509 = vdwg.mxu0
    %v510 = vmax.f32 %v507, 0.0
    %v511 = vld [vmem:[%s11] sm:$0x1]
    %v512 = vld [vmem:[#allocation2] sm:$0x1]
    %514 = vset.pattern.permute.xlu0 0
    %515 = vperm.xlu0 %514, %v512
    %v516 = vpop.permute.xlu0 %515
    %v518 = vlaneseq
    %v519 = vshrl.u32 %v518, 7
    %v520 = vsub.s32 0, %v519
    %v521 = vrot.slane %v516, %v520
    %v523 = vsel %vm436, %v511, 0
    %v526 = vsel %vm436, %v510, 0
    %528 = vmatprep.subr.mxu0 0.0
    %529 = vmatpush1.xpose.msra.mxu0 0.0
    %530 = vmatprep.subr.mxu0 0.0
    %531 = vmatpush1.xpose.msra.mxu0 0.0
    %532 = vmatprep.subr.mxu0 0.0
    %533 = vmatpush1.xpose.msra.mxu0 0.0
    %534 = vmatprep.subr.mxu0 0.0
    %535 = vmatpush1.xpose.msra.mxu0 0.0
    %536 = vmatprep.subr.mxu0 0.0
    %537 = vmatpush1.xpose.msra.mxu0 0.0
    %538 = vmatprep.subr.mxu0 0.0
    %539 = vmatpush1.xpose.msra.mxu0 0.0
    %540 = vmatprep.subr.mxu0 0.0
    %541 = vmatpush1.xpose.msra.mxu0 0.0
    %542 = vmatprep.subr.mxu0 0.0
    %543 = vmatpush1.xpose.msra.mxu0 0.0
    %544 = vmatprep.subr.mxu0 0.0
    %545 = vmatpush1.xpose.msra.mxu0 0.0
    %546 = vmatprep.subr.mxu0 0.0
    %547 = vmatpush1.xpose.msra.mxu0 0.0
    %548 = vmatprep.subr.mxu0 0.0
    %549 = vmatpush1.xpose.msra.mxu0 0.0
    %550 = vmatprep.subr.mxu0 0.0
    %551 = vmatpush1.xpose.msra.mxu0 0.0
    %552 = vmatprep.subr.mxu0 0.0
    %553 = vmatpush1.xpose.msra.mxu0 0.0
    %554 = vmatprep.subr.mxu0 0.0
    %555 = vmatpush1.xpose.msra.mxu0 0.0
    %556 = vmatprep.subr.mxu0 0.0
    %557 = vmatpush1.xpose.msra.mxu0 0.0
    %558 = vmatprep.subr.mxu0 0.0
    %559 = vmatpush1.xpose.msra.mxu0 %v526
    %560 = vmatprep.subr.mxu0 0.0
    %561 = vmatpush2.xpose.msra.mxu0 0.0
    %562 = vmatprep.subr.mxu0 0.0
    %563 = vmatpush2.xpose.msra.mxu0 0.0
    %564 = vmatprep.subr.mxu0 0.0
    %565 = vmatpush2.xpose.msra.mxu0 0.0
    %566 = vmatprep.subr.mxu0 0.0
    %567 = vmatpush2.xpose.msra.mxu0 0.0
    %568 = vmatprep.subr.mxu0 0.0
    %569 = vmatpush2.xpose.msra.mxu0 0.0
    %570 = vmatprep.subr.mxu0 0.0
    %571 = vmatpush2.xpose.msra.mxu0 0.0
    %572 = vmatprep.subr.mxu0 0.0
    %573 = vmatpush2.xpose.msra.mxu0 0.0
    %574 = vmatprep.subr.mxu0 0.0
    %575 = vmatpush2.xpose.msra.mxu0 0.0
    %576 = vmatprep.subr.mxu0 0.0
    %577 = vmatpush2.xpose.msra.mxu0 0.0
    %578 = vmatprep.subr.mxu0 0.0
    %579 = vmatpush2.xpose.msra.mxu0 0.0
    %580 = vmatprep.subr.mxu0 0.0
    %581 = vmatpush2.xpose.msra.mxu0 0.0
    %582 = vmatprep.subr.mxu0 0.0
    %583 = vmatpush2.xpose.msra.mxu0 0.0
    %584 = vmatprep.subr.mxu0 0.0
    %585 = vmatpush2.xpose.msra.mxu0 0.0
    %586 = vmatprep.subr.mxu0 0.0
    %587 = vmatpush2.xpose.msra.mxu0 0.0
    %588 = vmatprep.subr.mxu0 0.0
    %589 = vmatpush2.xpose.msra.mxu0 0.0
    %590 = vmatprep.subr.mxu0 0.0
    %591 = vmatpush2.xpose.msra.mxu0 0.0
    %592 = vmatprep.mubr.f32.mxu0 0.0
    %593 = vmatmul.mubr.f32.gmra.mxu0 %v523
    %v594 = vpop.f32.mrf.mxu0
    %v595 = vadd.f32 %v521, %v594
    %v596 = vpop.f32.mrf.mxu0
    %597 = vdwg.mxu0
    %vm598 = vcmask 57344
    %599 = vst.msk [vmem:[#allocation12] sm:$0x1] %vm598, %v595
    // Predicated region
    $region74: #{tpu_custom_call.1} parent=1 // pred_check
      _
    $region75: #{tpu_custom_call.1} parent=1 // pred_check_branch
      %601 = sbr.rel (0) target = $region77
    $region76: #{tpu_custom_call.1} parent=1 // pred_region
      %s603 = ssub.s32 16, 16
      %604 = vsyncadd [#allocation5], %s603
      %s606 = sshll.u32 [#allocation12], 4
      %s607 = int_to_ptr.vmem [resolvable:$true] %s606
      %609 = dma.vmem_to_hbm [thread:$0]  %s607, 16, %s13, [#allocation5]
    $region77: #{tpu_custom_call.1} parent=1 // pred_fallthru
      _
    // Predicated region
    $region78: #{tpu_custom_call.1} parent=1 // pred_check
      _
    $region79: #{tpu_custom_call.1} parent=1 // pred_check_branch
      %611 = sbr.rel (0) target = $region81
    $region80: #{tpu_custom_call.1} parent=1 // pred_region
      %612 = dma.done [#allocation5], 16
    $region81: #{tpu_custom_call.1} parent=1 // pred_fallthru
      _
    %613 = vsyncpa [#allocation4], 1
    %614 = vsyncpa [#allocation7], 1
    %615 = vsyncpa [#allocation10], 1
    %616 = vsyncpa [#allocation5], 1

</llo_original>
